<compile_context>
chip_gen: v6e
topology: v6e:2x2x1
jax: 0.10.0
libtpu: 0.0.40
codegen_flags: <defaults>
</compile_context>

<pallas_src>
import math
import numpy as np
import jax
import jax.numpy as jnp
from jax.experimental import pallas as pl
from jax.experimental.pallas import tpu as pltpu


# MXU input dtype. float32 keeps the in-script self-check tight on every
# generation; flip to jnp.bfloat16 on v6e/v7x for ~2x MXU throughput and half
# the activation HBM/VMEM traffic (accumulation stays f32 via
# preferred_element_type; relax the self-check tolerance accordingly).
MXU_DTYPE = jnp.float32

_VMEM_LIMIT = 32 * 1024 * 1024   # explicit scoped-VMEM budget (safe on v7x's 64 MiB)
_TARGET_PIX_ROWS = 256           # ~256-512 output pixel-rows per tile (DMA pipeline sweet spot)


def _cparams(n_grid):
    return pltpu.CompilerParams(
        dimension_semantics=("parallel",) * n_grid,
        vmem_limit_bytes=_VMEM_LIMIT)


def _pick_row_tile(nh, w):
    """Largest TRH dividing nh with TRH*w <= target pixel rows and TRH % 8 == 0
    (or TRH == nh), satisfying the (8,128) block constraint."""
    cap = max(1, _TARGET_PIX_ROWS // max(w, 1))
    for t in range(min(nh, cap), 0, -1):
        if nh % t == 0 and (t % 8 == 0 or t == nh):
            return t
    return nh


# ----------------------------------------------------------------------------
# Pallas kernels
# ----------------------------------------------------------------------------
def _conv_stats_kernel(*refs):
    """im2col conv row-tile + per-tile BN partial statistics.

    refs = (x_0..x_{n-1}, w_0..w_{n-1}, y_ref, stats_ref)
      x_i:       (R, K_i)    im2col rows of input i for this tile
      w_i:       (K_i, Cout) weight matrix for input i
      y_ref:     (R, Cout)   raw (pre-BN) conv output tile
      stats_ref: (1, 2, Cout) per-tile [sum, sum-of-squares] over rows

    Channel concatenation (torch.cat) is fused as K-partial dots across the
    n inputs; the 9 conv taps are fused into a single K = 9*Cin contraction.
    """
    n = (len(refs) - 2) // 2
    xs, ws = refs[:n], refs[n:2 * n]
    y_ref, stats_ref = refs[2 * n], refs[2 * n + 1]

    acc = jnp.dot(xs[0][...], ws[0][...], preferred_element_type=jnp.float32)
    for x, w in zip(xs[1:], ws[1:]):
        acc = acc + jnp.dot(x[...], w[...], preferred_element_type=jnp.float32)

    y_ref[...] = acc
    ssum = jnp.sum(acc, axis=0, keepdims=True)           # (1, Cout)
    ssq = jnp.sum(acc * acc, axis=0, keepdims=True)      # (1, Cout)
    stats_ref[...] = jnp.concatenate([ssum, ssq], axis=0)[None]


def _bn_relu_kernel(y_ref, scale_ref, shift_ref, o_ref):
    """Per-channel affine + ReLU on a lane-dense (rows, W*Cout) slab."""
    o_ref[...] = jnp.maximum(y_ref[...] * scale_ref[...] + shift_ref[...], 0.0)


def _bilinear_up_kernel(x_ref, w_ref, o_ref):
    """Polyphase depthwise ConvTranspose2d(kernel=2*up, stride=up, pad=up//2).

    x_ref: (1, H+2, W+2, C)  input padded by a 1-pixel halo
    w_ref: (k*k,) in SMEM    flipped bilinear taps (shared across channels)
    o_ref: (1, up*H, W, up*C)  same bytes as (1, up*H, up*W, C)

    Each of the up*up output phases needs only 2x2 taps of the ORIGINAL input
    (the zero-inserted positions of the transposed conv are skipped entirely).
    Column phases are interleaved by a lane-axis concat, row phases by a
    batch-dim stack -- both layout-trivial.
    """
    H = x_ref.shape[1] - 2
    W = x_ref.shape[2] - 2
    C = x_ref.shape[3]
    s = o_ref.shape[3] // C
    k = 2 * s

    def taps_for(phase):
        # returns (halo row/col offsets into the padded input, first tap index)
        if phase < s // 2:
            return (0, 1), s // 2 - 1 - phase
        return (1, 2), 3 * s // 2 - 1 - phase

    row_slabs = []
    for py in range(s):
        roff, i0 = taps_for(py)
        col_phases = []
        for px in range(s):
            coff, j0 = taps_for(px)
            acc = None
            for a in range(2):
                for b in range(2):
                    tap = w_ref[(i0 + a * s) * k + (j0 + b * s)]
                    term = x_ref[:, roff[a]:roff[a] + H, coff[b]:coff[b] + W, :] * tap
                    acc = term if acc is None else acc + term
            col_phases.append(acc)
        # interleave the s column phases along lanes: (1, H, W, s*C)
        row_slabs.append(jnp.concatenate(col_phases, axis=-1))
    # interleave the s row phases along the (batch) H dim: (1, s*H, W, s*C)
    o_ref[...] = jnp.stack(row_slabs, axis=2).reshape(1, s * H, W, s * C)


# ----------------------------------------------------------------------------
# Wrappers
# ----------------------------------------------------------------------------
def _im2col_3x3(x):
    """(N,H,W,C) -> (N*H*W, 9*C), tap-major then channel (matches w.reshape)."""
    N, H, W, C = x.shape
    xp = jnp.pad(x, ((0, 0), (1, 1), (1, 1), (0, 0)))
    taps = [xp[:, ky:ky + H, kx:kx + W, :] for ky in range(3) for kx in range(3)]
    return jnp.concatenate(taps, axis=-1).reshape(N * H * W, 9 * C)


def conv3x3_bn_relu(xs, w_mats, gamma, beta):
    """Fused 3x3 conv (channel-concat of `xs`) -> BatchNorm2d(batch stats) -> ReLU.

    xs:     list of NHWC inputs that PyTorch would torch.cat along channels.
    w_mats: list of (9*C_i, Cout) weight matrices, split/ordered like xs.
    """
    N, H, W, _ = xs[0].shape
    for x in xs[1:]:
        assert x.shape[:3] == (N, H, W)
    Cout = int(w_mats[0].shape[-1])
    for x, w in zip(xs, w_mats):
        assert int(w.shape[0]) == 9 * int(x.shape[-1])
    NH, NHW, WC = N * H, N * H * W, W * Cout

    cols = [_im2col_3x3(x).astype(MXU_DTYPE) for x in xs]
    wms = [w.astype(MXU_DTYPE) for w in w_mats]

    trh = _pick_row_tile(NH, W)          # image-rows per tile
    nt = NH // trh                       # grid size
    rows = trh * W                       # im2col rows per tile

    in_specs = [pl.BlockSpec((rows, int(c.shape[1])), lambda r: (r, 0)) for c in cols]
    in_specs += [pl.BlockSpec(tuple(w.shape), lambda r: (0, 0)) for w in wms]

    # Pass 1: tiled conv + per-tile BN partials ("parallel" grid, pipelined DMA).
    y, stats = pl.pallas_call(
        _conv_stats_kernel,
        out_shape=(jax.ShapeDtypeStruct((NHW, Cout), jnp.float32),
                   jax.ShapeDtypeStruct((nt, 2, Cout), jnp.float32)),
        grid=(nt,),
        in_specs=in_specs,
        out_specs=[pl.BlockSpec((rows, Cout), lambda r: (r, 0)),
                   pl.BlockSpec((1, 2, Cout), lambda r: (r, 0, 0))],
        compiler_params=_cparams(1),
    )(*cols, *wms)

    # Glue: reduce per-tile partials -> BN scale/shift (one-pass E[x^2]-E[x]^2).
    # NOTE: training-mode (biased) batch statistics, matching nn.BatchNorm2d
    # default forward during training.
    tot = jnp.sum(stats, axis=0)
    cnt = jnp.float32(NHW)
    mean = tot[0] / cnt
    var = jnp.maximum(tot[1] / cnt - mean * mean, 0.0)
    scale = gamma * jax.lax.rsqrt(var + 1e-5)
    shift = beta - mean * scale
    scale_row = jnp.tile(scale, W).reshape(1, WC)
    shift_row = jnp.tile(shift, W).reshape(1, WC)

    # Pass 2: scale/shift + ReLU on a lane-dense (N*H, W*Cout) slab.
    # The (NHW, Cout) -> (NH, W*Cout) reshape is free (same row-major bytes).
    out = pl.pallas_call(
        _bn_relu_kernel,
        out_shape=jax.ShapeDtypeStruct((NH, WC), jnp.float32),
        grid=(nt,),
        in_specs=[pl.BlockSpec((trh, WC), lambda r: (r, 0)),
                  pl.BlockSpec((1, WC), lambda r: (0, 0)),
                  pl.BlockSpec((1, WC), lambda r: (0, 0))],
        out_specs=pl.BlockSpec((trh, WC), lambda r: (r, 0)),
        compiler_params=_cparams(1),
    )(y.reshape(NH, WC), scale_row, shift_row)
    return out.reshape(N, H, W, Cout)


def bilinear_upsample(x, up_taps, up):
    """Depthwise ConvTranspose2d(kernel=2*up, stride=up, padding=up//2, groups=C)
    with the shared bilinear kernel, as a polyphase Pallas kernel."""
    # TODO(synk): odd up factors (incl. up=1, whose output is H+1) are not used
    # by this module instance; only the even-stride polyphase path is implemented.
    assert up % 2 == 0 and up >= 2
    N, H, W, C = x.shape
    x_pad = jnp.pad(x, ((0, 0), (1, 1), (1, 1), (0, 0)))
    out = pl.pallas_call(
        _bilinear_up_kernel,
        out_shape=jax.ShapeDtypeStruct((N, up * H, W, up * C), jnp.float32),
        grid=(N,),
        in_specs=[pl.BlockSpec((1, H + 2, W + 2, C), lambda n: (n, 0, 0, 0)),
                  pl.BlockSpec(memory_space=pltpu.MemorySpace.SMEM)],
        out_specs=pl.BlockSpec((1, up * H, W, up * C), lambda n: (n, 0, 0, 0)),
        compiler_params=_cparams(1),
    )(x_pad, up_taps)
    # (N, up*H, W, up*C) and (N, up*H, up*W, C) share the same row-major bytes.
    return out.reshape(N, up * H, up * W, C)


# ----------------------------------------------------------------------------
# IDAUp parameters (deterministic, mirroring the PyTorch __init__)
# ----------------------------------------------------------------------------
def make_ida_up_params(key, in_channels_list, up_factors_list, out_channels):
    params = {}
    std = math.sqrt(2.0 / (3 * 3 * out_channels))   # init_weights for Conv2d
    for i in range(1, len(in_channels_list)):
        cin = in_channels_list[i]
        up = int(up_factors_list[i])
        key, k1, k2 = jax.random.split(key, 3)
        proj_w = jax.random.normal(k1, (3, 3, cin, out_channels), jnp.float32) * std
        node_w = jax.random.normal(k2, (3, 3, 2 * out_channels, out_channels),
                                   jnp.float32) * std
        # fill_upconv_weights: bilinear kernel shared across channels
        k_up = 2 * up
        f = math.ceil(k_up / 2)
        c = (2 * f - 1 - f % 2) / (2.0 * f)
        idx = np.arange(k_up, dtype=np.float64)
        w1 = 1.0 - np.abs(idx / f - c)
        up_w = jnp.asarray(np.outer(w1, w1), jnp.float32)
        params[i] = dict(
            up_factor=up,
            # raw (PyTorch-layout) parameters, used by the pure-JAX reference
            proj_w=proj_w, node_w=node_w, up_w=up_w,
            proj_gamma=jnp.ones((out_channels,), jnp.float32),
            proj_beta=jnp.zeros((out_channels,), jnp.float32),
            node_gamma=jnp.ones((out_channels,), jnp.float32),
            node_beta=jnp.zeros((out_channels,), jnp.float32),
            # kernel-ready forms precomputed ONCE (not per forward call)
            proj_w_mat=proj_w.reshape(9 * cin, out_channels),
            node_w_a=node_w[:, :, :out_channels, :].reshape(9 * out_channels, out_channels),
            node_w_b=node_w[:, :, out_channels:, :].reshape(9 * out_channels, out_channels),
            up_taps=jnp.flip(up_w, axis=(0, 1)).reshape(-1),
        )
    return params


def ida_up_forward(layers, params):
    """layers: list of NHWC tensors. Mirrors IDAUp.forward."""
    layers = list(layers)
    for i in range(1, len(layers)):
        p = params[i]
        x = conv3x3_bn_relu([layers[i]], [p["proj_w_mat"]],
                            p["proj_gamma"], p["proj_beta"])
        x = bilinear_upsample(x, p["up_taps"], p["up_factor"])
        # torch.cat([layers[i-1], x], dim=1) is fused into the node conv as two
        # K-partial MXU dots; the concatenated tensor never materializes in HBM.
        layers[i] = conv3x3_bn_relu([layers[i - 1], x],
                                    [p["node_w_a"], p["node_w_b"]],
                                    p["node_gamma"], p["node_beta"])
    return layers


# ----------------------------------------------------------------------------
# Pure-JAX reference (correctness cross-check of the Pallas kernels)
# ----------------------------------------------------------------------------
def _ref_conv_bn_relu(x, w, gamma, beta):
    y = jax.lax.conv_general_dilated(
        x, w, (1, 1), ((1, 1), (1, 1)),
        dimension_numbers=("NHWC", "HWIO", "NHWC"),
        precision=jax.lax.Precision.HIGHEST)
    mean = jnp.mean(y, axis=(0, 1, 2), keepdims=True)
    var = jnp.mean((y - mean) ** 2, axis=(0, 1, 2), keepdims=True)
    y = (y - mean) * gamma * jax.lax.rsqrt(var + 1e-5) + beta
    return jnp.maximum(y, 0.0)


def _ref_upsample(x, w_kk, up):
    C = x.shape[-1]
    k = 2 * up
    p = up // 2
    wf = jnp.flip(w_kk, axis=(0, 1))
    w = jnp.broadcast_to(wf[:, :, None, None], (k, k, 1, C))
    pad = k - 1 - p
    return jax.lax.conv_general_dilated(
        x, w, (1, 1), ((pad, pad), (pad, pad)), lhs_dilation=(up, up),
        dimension_numbers=("NHWC", "HWIO", "NHWC"), feature_group_count=C,
        precision=jax.lax.Precision.HIGHEST)


def _ref_forward(layers, params):
    layers = list(layers)
    for i in range(1, len(layers)):
        p = params[i]
        x = _ref_conv_bn_relu(layers[i], p["proj_w"], p["proj_gamma"], p["proj_beta"])
        x = _ref_upsample(x, p["up_w"], p["up_factor"])
        cat = jnp.concatenate([layers[i - 1], x], axis=-1)
        layers[i] = _ref_conv_bn_relu(cat, p["node_w"], p["node_gamma"], p["node_beta"])
    return layers


# ----------------------------------------------------------------------------
if __name__ == "__main__":
    in_channels_list = (4, 8, 8)
    up_factors_list = (1, 2, 2)
    out_channels = 4
    N = 2

    kp, k0, k1, k2 = jax.random.split(jax.random.PRNGKey(0), 4)

    # PyTorch-convention NCHW inputs (the module's `layers` tuple).
    layers_nchw = [
        jax.random.normal(k0, (N, 4, 16, 16), jnp.float32),
        jax.random.normal(k1, (N, 8, 8, 8), jnp.float32),
        jax.random.normal(k2, (N, 8, 8, 8), jnp.float32),
    ]
    # Transpose to NHWC for the TPU kernels.
    layers = [jnp.transpose(x, (0, 2, 3, 1)) for x in layers_nchw]

    params = make_ida_up_params(kp, in_channels_list, up_factors_list, out_channels)

    out = ida_up_forward(layers, params)
    out = [jax.block_until_ready(o) for o in out]

    # Cross-check against a pure-JAX reference of the same math.
    ref = _ref_forward(layers, params)
    for o, r in zip(out, ref):
        np.testing.assert_allclose(np.asarray(o), np.asarray(r),
                                   rtol=2e-3, atol=2e-3)

    # Back to the PyTorch NCHW output convention.
    out_nchw = [jnp.transpose(o, (0, 3, 1, 2)) for o in out]
    _ = [jax.block_until_ready(o) for o in out_nchw]

    print("KERNEL_OK")
</pallas_src>

<mosaic_0001>
module attributes {stable_mosaic.version = 11 : i64} {
  func.func @_conv_stats_kernel(%arg0: i32, %arg1: memref<128x72xf32, #tpu.memory_space<vmem>>, %arg2: memref<72x4xf32, #tpu.memory_space<vmem>>, %arg3: memref<128x4xf32, #tpu.memory_space<vmem>>, %arg4: memref<1x2x4xf32, #tpu.memory_space<vmem>>) attributes {dimension_semantics = [#tpu.dimension_semantics<parallel>], iteration_bounds = array<i64: 1>, scalar_prefetch = 0 : i64, scratch_operands = 0 : i64, tpu.core_type = #tpu.core_type<tc>, window_params = [{transform_indices = @transform_0, window_bounds = array<i64: 128, 72>}, {pipeline_mode = #tpu.pipeline_mode<synchronous>, transform_indices = @transform_1, window_bounds = array<i64: 72, 4>}, {transform_indices = @transform_2, window_bounds = array<i64: 128, 4>}, {transform_indices = @transform_3, window_bounds = array<i64: 1, 2, 4>}]} {
    %c0 = arith.constant 0 : index
    %c0_0 = arith.constant 0 : index
    %0 = vector.load %arg1[%c0, %c0_0] : memref<128x72xf32, #tpu.memory_space<vmem>>, vector<128x72xf32>
    %c0_1 = arith.constant 0 : index
    %c0_2 = arith.constant 0 : index
    %1 = vector.load %arg2[%c0_1, %c0_2] : memref<72x4xf32, #tpu.memory_space<vmem>>, vector<72x4xf32>
    %cst = arith.constant dense<0.000000e+00> : vector<128x4xf32>
    %2 = tpu.matmul %0, %1, %cst {dimension_numbers = #tpu.dot_dimension_numbers<[1], [0], [0], [1], [0, 0, 1, 1], [], []>} : vector<128x72xf32>, vector<72x4xf32>, vector<128x4xf32> -> vector<128x4xf32>
    %c0_3 = arith.constant 0 : index
    %c0_4 = arith.constant 0 : index
    %3 = vector.load %arg3[%c0_3, %c0_4] : memref<128x4xf32, #tpu.memory_space<vmem>>, vector<128x4xf32>
    tpu.vector_store %arg3[%c0_3, %c0_4], %2 {strides = array<i32>} : memref<128x4xf32, #tpu.memory_space<vmem>>, vector<128x4xf32>,
    %cst_5 = arith.constant dense<0.000000e+00> : vector<4xf32>
    %4 = vector.multi_reduction <add>, %2, %cst_5 [0] : vector<128x4xf32> to vector<4xf32>
    %5 = vector.shape_cast %4 : vector<4xf32> to vector<1x4xf32>
    %6 = arith.mulf %2, %2 : vector<128x4xf32>
    %cst_6 = arith.constant dense<0.000000e+00> : vector<4xf32>
    %7 = vector.multi_reduction <add>, %6, %cst_6 [0] : vector<128x4xf32> to vector<4xf32>
    %8 = vector.shape_cast %7 : vector<4xf32> to vector<1x4xf32>
    %9 = tpu.concatenate %5, %8 in 0 : vector<1x4xf32>, vector<1x4xf32> -> vector<2x4xf32>
    %10 = vector.shape_cast %9 : vector<2x4xf32> to vector<1x2x4xf32>
    %c0_7 = arith.constant 0 : index
    %c0_8 = arith.constant 0 : index
    %c0_9 = arith.constant 0 : index
    %11 = vector.load %arg4[%c0_7, %c0_8, %c0_9] : memref<1x2x4xf32, #tpu.memory_space<vmem>>, vector<1x2x4xf32>
    tpu.vector_store %arg4[%c0_7, %c0_8, %c0_9], %10 {strides = array<i32>} : memref<1x2x4xf32, #tpu.memory_space<vmem>>, vector<1x2x4xf32>,
    return
  }
  func.func @transform_0(%arg0: i32) -> (i32, i32) {
    %c0_i32 = arith.constant 0 : i32
    %c0_i32_0 = arith.constant 0 : i32
    return %arg0, %c0_i32 : i32, i32
  }
  func.func @transform_1(%arg0: i32) -> (i32, i32) {
    %c0_i32 = arith.constant 0 : i32
    %c0_i32_0 = arith.constant 0 : i32
    %c0_i32_1 = arith.constant 0 : i32
    return %c0_i32, %c0_i32_0 : i32, i32
  }
  func.func @transform_2(%arg0: i32) -> (i32, i32) {
    %c0_i32 = arith.constant 0 : i32
    %c0_i32_0 = arith.constant 0 : i32
    return %arg0, %c0_i32 : i32, i32
  }
  func.func @transform_3(%arg0: i32) -> (i32, i32, i32) {
    %c0_i32 = arith.constant 0 : i32
    %c0_i32_0 = arith.constant 0 : i32
    %c0_i32_1 = arith.constant 0 : i32
    return %arg0, %c0_i32, %c0_i32_0 : i32, i32, i32
  }
}

</mosaic_0001>

<llo_original>
// kernel: tpu_custom_call.1
$region0: #{tpu_custom_call.1}
  #allocation0 [shape = 'u32[]', space=smem, size = 0x4, offset = 0x4, fixed_abs, tag = 'smem constant byte address 0x4 - core index']
  #allocation1 [shape = 'u32[144,128]{1,0:T(1,128)}', space=vmem, size = 0x12000, scoped, tag = 'internal scratch']
  %s0 = inlined_call_operand.vmem [shape: f32[128,72], index: 0, kind: input, shape index: {}]
  %s1 = inlined_call_operand.vmem [shape: f32[72,4], index: 1, kind: input, shape index: {}]
  %s2 = inlined_call_operand.vmem [shape: f32[128,4], index: 2, kind: output, shape index: {0}]
  %s3 = inlined_call_operand.hbm [shape: f32[1,2,4], index: 3, kind: output, shape index: {1}]
  %4 = xla_tuple %s2, %s3
  %s5 = sld [smem:[#allocation0]]
  $region26: #{tpu_custom_call.1} parent=0
    _
  %s7 = ssub.s32 1, %s5
  %s8 = scalar_select 0, %s7, %s5
  $region1: #{tpu_custom_call.1} parent=0
    #allocation2 [shape = 'u8[1024]{0}', space=vmem, size = 0x400, scoped, tag = 'output window, operand 1, single buffered']
    #allocation3 [shape = 's32[1]{0}', space=sflag, size = 0x4, scoped, tag = 'scoped memory for tpu_custom_call.1']
    %9 = vsyncpa [#allocation3], 0
    // Predicated region
    $region2: #{tpu_custom_call.1} parent=1 // pred_check
      _
    $region3: #{tpu_custom_call.1} parent=1 // pred_check_branch
      %11 = sbr.rel (0) target = $region5
    $region4: #{tpu_custom_call.1} parent=1 // pred_region
      _
    $region5: #{tpu_custom_call.1} parent=1 // pred_fallthru
      _
    // Predicated region
    $region6: #{tpu_custom_call.1} parent=1 // pred_check
      _
    $region7: #{tpu_custom_call.1} parent=1 // pred_check_branch
      %13 = sbr.rel (0) target = $region9
    $region8: #{tpu_custom_call.1} parent=1 // pred_region
      _
    $region9: #{tpu_custom_call.1} parent=1 // pred_fallthru
      _
    %v14 = vld [vmem:[%s0] sm:$0xff]
    %v15 = vld [vmem:[%s0 + $0x8] sm:$0xff]
    %v16 = vld [vmem:[%s0 + $0x10] sm:$0xff]
    %v17 = vld [vmem:[%s0 + $0x18] sm:$0xff]
    %v18 = vld [vmem:[%s0 + $0x20] sm:$0xff]
    %v19 = vld [vmem:[%s0 + $0x28] sm:$0xff]
    %v20 = vld [vmem:[%s0 + $0x30] sm:$0xff]
    %v21 = vld [vmem:[%s0 + $0x38] sm:$0xff]
    %v22 = vld [vmem:[%s0 + $0x40] sm:$0xff]
    %v23 = vld [vmem:[%s0 + $0x48] sm:$0xff]
    %v24 = vld [vmem:[%s0 + $0x50] sm:$0xff]
    %v25 = vld [vmem:[%s0 + $0x58] sm:$0xff]
    %v26 = vld [vmem:[%s0 + $0x60] sm:$0xff]
    %v27 = vld [vmem:[%s0 + $0x68] sm:$0xff]
    %v28 = vld [vmem:[%s0 + $0x70] sm:$0xff]
    %v29 = vld [vmem:[%s0 + $0x78] sm:$0xff]
    %v30 = vld [vmem:[%s1] sm:$0xff]
    %v31 = vld [vmem:[%s1 + $0x8] sm:$0xff]
    %v32 = vld [vmem:[%s1 + $0x10] sm:$0xff]
    %v33 = vld [vmem:[%s1 + $0x18] sm:$0xff]
    %v34 = vld [vmem:[%s1 + $0x20] sm:$0xff]
    %v35 = vld [vmem:[%s1 + $0x28] sm:$0xff]
    %v36 = vld [vmem:[%s1 + $0x30] sm:$0xff]
    %v37 = vld [vmem:[%s1 + $0x38] sm:$0xff]
    %v38 = vld [vmem:[%s1 + $0x40] sm:$0xff]
    %vm39 = vcmask 588800
    %v41 = vsel %vm39, %v14, 0
    %v44 = vsel %vm39, %v15, 0
    %v47 = vsel %vm39, %v16, 0
    %v50 = vsel %vm39, %v17, 0
    %v53 = vsel %vm39, %v18, 0
    %v56 = vsel %vm39, %v19, 0
    %v59 = vsel %vm39, %v20, 0
    %v62 = vsel %vm39, %v21, 0
    %v65 = vsel %vm39, %v22, 0
    %v68 = vsel %vm39, %v23, 0
    %v71 = vsel %vm39, %v24, 0
    %v74 = vsel %vm39, %v25, 0
    %v77 = vsel %vm39, %v26, 0
    %v80 = vsel %vm39, %v27, 0
    %v83 = vsel %vm39, %v28, 0
    %v86 = vsel %vm39, %v29, 0
    %88 = vmatprep.subr.mxu0 0.0
    %89 = vmatpush1.msra.mxu0 0.0
    %90 = vmatprep.subr.mxu0 0.0
    %91 = vmatpush1.msra.mxu0 0.0
    %92 = vmatprep.subr.mxu0 0.0
    %93 = vmatpush1.msra.mxu0 0.0
    %94 = vmatprep.subr.mxu0 0.0
    %95 = vmatpush1.msra.mxu0 0.0
    %96 = vmatprep.subr.mxu0 0.0
    %97 = vmatpush1.msra.mxu0 0.0
    %98 = vmatprep.subr.mxu0 0.0
    %99 = vmatpush1.msra.mxu0 0.0
    %100 = vmatprep.subr.mxu0 0.0
    %101 = vmatpush1.msra.mxu0 0.0
    %102 = vmatprep.subr.mxu0 0.0
    %103 = vmatpush1.msra.mxu0 %v38
    %104 = vmatprep.subr.mxu0 0.0
    %105 = vmatpush1.msra.mxu0 %v37
    %106 = vmatprep.subr.mxu0 0.0
    %107 = vmatpush1.msra.mxu0 %v36
    %108 = vmatprep.subr.mxu0 0.0
    %109 = vmatpush1.msra.mxu0 %v35
    %110 = vmatprep.subr.mxu0 0.0
    %111 = vmatpush1.msra.mxu0 %v34
    %112 = vmatprep.subr.mxu0 0.0
    %113 = vmatpush1.msra.mxu0 %v33
    %114 = vmatprep.subr.mxu0 0.0
    %115 = vmatpush1.msra.mxu0 %v32
    %116 = vmatprep.subr.mxu0 0.0
    %117 = vmatpush1.msra.mxu0 %v31
    %118 = vmatprep.subr.mxu0 0.0
    %119 = vmatpush1.msra.mxu0 %v30
    %120 = vmatprep.subr.mxu0 0.0
    %121 = vmatpush2.msra.mxu0 0.0
    %122 = vmatprep.subr.mxu0 0.0
    %123 = vmatpush2.msra.mxu0 0.0
    %124 = vmatprep.subr.mxu0 0.0
    %125 = vmatpush2.msra.mxu0 0.0
    %126 = vmatprep.subr.mxu0 0.0
    %127 = vmatpush2.msra.mxu0 0.0
    %128 = vmatprep.subr.mxu0 0.0
    %129 = vmatpush2.msra.mxu0 0.0
    %130 = vmatprep.subr.mxu0 0.0
    %131 = vmatpush2.msra.mxu0 0.0
    %132 = vmatprep.subr.mxu0 0.0
    %133 = vmatpush2.msra.mxu0 0.0
    %134 = vmatprep.subr.mxu0 0.0
    %135 = vmatpush2.msra.mxu0 0.0
    %136 = vmatprep.subr.mxu0 0.0
    %137 = vmatpush2.msra.mxu0 0.0
    %138 = vmatprep.subr.mxu0 0.0
    %139 = vmatpush2.msra.mxu0 0.0
    %140 = vmatprep.subr.mxu0 0.0
    %141 = vmatpush2.msra.mxu0 0.0
    %142 = vmatprep.subr.mxu0 0.0
    %143 = vmatpush2.msra.mxu0 0.0
    %144 = vmatprep.subr.mxu0 0.0
    %145 = vmatpush2.msra.mxu0 0.0
    %146 = vmatprep.subr.mxu0 0.0
    %147 = vmatpush2.msra.mxu0 0.0
    %148 = vmatprep.subr.mxu0 0.0
    %149 = vmatpush2.msra.mxu0 0.0
    %150 = vmatprep.subr.mxu0 0.0
    %151 = vmatpush2.msra.mxu0 0.0
    %152 = vmatprep.mubr.f32.mxu0 0.0
    %153 = vmatmul.mubr.f32.gmra.mxu0 %v41
    %v154 = vpop.f32.mrf.mxu0
    %v155 = vadd.f32 0.0, %v154
    %v156 = vpop.f32.mrf.mxu0
    %157 = vmatprep.mubr.f32.mxu0 0.0
    %158 = vmatmul.mubr.f32.gmra.mxu0 %v44
    %v159 = vpop.f32.mrf.mxu0
    %v160 = vadd.f32 0.0, %v159
    %v161 = vpop.f32.mrf.mxu0
    %162 = vmatprep.mubr.f32.mxu0 0.0
    %163 = vmatmul.mubr.f32.gmra.mxu0 %v47
    %v164 = vpop.f32.mrf.mxu0
    %v165 = vadd.f32 0.0, %v164
    %v166 = vpop.f32.mrf.mxu0
    %167 = vmatprep.mubr.f32.mxu0 0.0
    %168 = vmatmul.mubr.f32.gmra.mxu0 %v50
    %v169 = vpop.f32.mrf.mxu0
    %v170 = vadd.f32 0.0, %v169
    %v171 = vpop.f32.mrf.mxu0
    %172 = vmatprep.mubr.f32.mxu0 0.0
    %173 = vmatmul.mubr.f32.gmra.mxu0 %v53
    %v174 = vpop.f32.mrf.mxu0
    %v175 = vadd.f32 0.0, %v174
    %v176 = vpop.f32.mrf.mxu0
    %177 = vmatprep.mubr.f32.mxu0 0.0
    %178 = vmatmul.mubr.f32.gmra.mxu0 %v56
    %v179 = vpop.f32.mrf.mxu0
    %v180 = vadd.f32 0.0, %v179
    %v181 = vpop.f32.mrf.mxu0
    %182 = vmatprep.mubr.f32.mxu0 0.0
    %183 = vmatmul.mubr.f32.gmra.mxu0 %v59
    %v184 = vpop.f32.mrf.mxu0
    %v185 = vadd.f32 0.0, %v184
    %v186 = vpop.f32.mrf.mxu0
    %187 = vmatprep.mubr.f32.mxu0 0.0
    %188 = vmatmul.mubr.f32.gmra.mxu0 %v62
    %v189 = vpop.f32.mrf.mxu0
    %v190 = vadd.f32 0.0, %v189
    %v191 = vpop.f32.mrf.mxu0
    %192 = vmatprep.mubr.f32.mxu0 0.0
    %193 = vmatmul.mubr.f32.gmra.mxu0 %v65
    %v194 = vpop.f32.mrf.mxu0
    %v195 = vadd.f32 0.0, %v194
    %v196 = vpop.f32.mrf.mxu0
    %197 = vmatprep.mubr.f32.mxu0 0.0
    %198 = vmatmul.mubr.f32.gmra.mxu0 %v68
    %v199 = vpop.f32.mrf.mxu0
    %v200 = vadd.f32 0.0, %v199
    %v201 = vpop.f32.mrf.mxu0
    %202 = vmatprep.mubr.f32.mxu0 0.0
    %203 = vmatmul.mubr.f32.gmra.mxu0 %v71
    %v204 = vpop.f32.mrf.mxu0
    %v205 = vadd.f32 0.0, %v204
    %v206 = vpop.f32.mrf.mxu0
    %207 = vmatprep.mubr.f32.mxu0 0.0
    %208 = vmatmul.mubr.f32.gmra.mxu0 %v74
    %v209 = vpop.f32.mrf.mxu0
    %v210 = vadd.f32 0.0, %v209
    %v211 = vpop.f32.mrf.mxu0
    %212 = vmatprep.mubr.f32.mxu0 0.0
    %213 = vmatmul.mubr.f32.gmra.mxu0 %v77
    %v214 = vpop.f32.mrf.mxu0
    %v215 = vadd.f32 0.0, %v214
    %v216 = vpop.f32.mrf.mxu0
    %217 = vmatprep.mubr.f32.mxu0 0.0
    %218 = vmatmul.mubr.f32.gmra.mxu0 %v80
    %v219 = vpop.f32.mrf.mxu0
    %v220 = vadd.f32 0.0, %v219
    %v221 = vpop.f32.mrf.mxu0
    %222 = vmatprep.mubr.f32.mxu0 0.0
    %223 = vmatmul.mubr.f32.gmra.mxu0 %v83
    %v224 = vpop.f32.mrf.mxu0
    %v225 = vadd.f32 0.0, %v224
    %v226 = vpop.f32.mrf.mxu0
    %227 = vmatprep.mubr.f32.mxu0 0.0
    %228 = vmatmul.mubr.f32.gmra.mxu0 %v86
    %v229 = vpop.f32.mrf.mxu0
    %v230 = vadd.f32 0.0, %v229
    %v231 = vpop.f32.mrf.mxu0
    %232 = vdwg.mxu0
    %vm233 = vcmask 31744
    %234 = vst.msk [vmem:[%s2] sm:$0xff] %vm233, %v155
    %235 = vst.msk [vmem:[%s2 + $0x8] sm:$0xff] %vm233, %v160
    %236 = vst.msk [vmem:[%s2 + $0x10] sm:$0xff] %vm233, %v165
    %237 = vst.msk [vmem:[%s2 + $0x18] sm:$0xff] %vm233, %v170
    %238 = vst.msk [vmem:[%s2 + $0x20] sm:$0xff] %vm233, %v175
    %239 = vst.msk [vmem:[%s2 + $0x28] sm:$0xff] %vm233, %v180
    %240 = vst.msk [vmem:[%s2 + $0x30] sm:$0xff] %vm233, %v185
    %241 = vst.msk [vmem:[%s2 + $0x38] sm:$0xff] %vm233, %v190
    %242 = vst.msk [vmem:[%s2 + $0x40] sm:$0xff] %vm233, %v195
    %243 = vst.msk [vmem:[%s2 + $0x48] sm:$0xff] %vm233, %v200
    %244 = vst.msk [vmem:[%s2 + $0x50] sm:$0xff] %vm233, %v205
    %245 = vst.msk [vmem:[%s2 + $0x58] sm:$0xff] %vm233, %v210
    %246 = vst.msk [vmem:[%s2 + $0x60] sm:$0xff] %vm233, %v215
    %247 = vst.msk [vmem:[%s2 + $0x68] sm:$0xff] %vm233, %v220
    %248 = vst.msk [vmem:[%s2 + $0x70] sm:$0xff] %vm233, %v225
    %249 = vst.msk [vmem:[%s2 + $0x78] sm:$0xff] %vm233, %v230
    %v250 = vsel %vm233, %v155, 0.0
    %v251 = vsel %vm233, %v160, 0.0
    %v252 = vadd.f32 %v250, %v251
    %v253 = vsel %vm233, %v165, 0.0
    %v254 = vadd.f32 %v252, %v253
    %v255 = vsel %vm233, %v170, 0.0
    %v256 = vadd.f32 %v254, %v255
    %v257 = vsel %vm233, %v175, 0.0
    %v258 = vadd.f32 %v256, %v257
    %v259 = vsel %vm233, %v180, 0.0
    %v260 = vadd.f32 %v258, %v259
    %v261 = vsel %vm233, %v185, 0.0
    %v262 = vadd.f32 %v260, %v261
    %v263 = vsel %vm233, %v190, 0.0
    %v264 = vadd.f32 %v262, %v263
    %v265 = vsel %vm233, %v195, 0.0
    %v266 = vadd.f32 %v264, %v265
    %v267 = vsel %vm233, %v200, 0.0
    %v268 = vadd.f32 %v266, %v267
    %v269 = vsel %vm233, %v205, 0.0
    %v270 = vadd.f32 %v268, %v269
    %v271 = vsel %vm233, %v210, 0.0
    %v272 = vadd.f32 %v270, %v271
    %v273 = vsel %vm233, %v215, 0.0
    %v274 = vadd.f32 %v272, %v273
    %v275 = vsel %vm233, %v220, 0.0
    %v276 = vadd.f32 %v274, %v275
    %v277 = vsel %vm233, %v225, 0.0
    %v278 = vadd.f32 %v276, %v277
    %v279 = vsel %vm233, %v230, 0.0
    %v280 = vadd.f32 %v278, %v279
    %v281 = vrot.slane %v280, 4
    %v282 = vadd.f32 %v280, %v281
    %v283 = vrot.slane %v282, 2
    %v284 = vadd.f32 %v282, %v283
    %v285 = vrot.slane %v284, 1
    %v286 = vadd.f32 %v284, %v285
    %v287 = vmul.f32 %v155, %v155
    %v288 = vmul.f32 %v160, %v160
    %v289 = vmul.f32 %v165, %v165
    %v290 = vmul.f32 %v170, %v170
    %v291 = vmul.f32 %v175, %v175
    %v292 = vmul.f32 %v180, %v180
    %v293 = vmul.f32 %v185, %v185
    %v294 = vmul.f32 %v190, %v190
    %v295 = vmul.f32 %v195, %v195
    %v296 = vmul.f32 %v200, %v200
    %v297 = vmul.f32 %v205, %v205
    %v298 = vmul.f32 %v210, %v210
    %v299 = vmul.f32 %v215, %v215
    %v300 = vmul.f32 %v220, %v220
    %v301 = vmul.f32 %v225, %v225
    %v302 = vmul.f32 %v230, %v230
    %v303 = vsel %vm233, %v287, 0.0
    %v304 = vsel %vm233, %v288, 0.0
    %v305 = vadd.f32 %v303, %v304
    %v306 = vsel %vm233, %v289, 0.0
    %v307 = vadd.f32 %v305, %v306
    %v308 = vsel %vm233, %v290, 0.0
    %v309 = vadd.f32 %v307, %v308
    %v310 = vsel %vm233, %v291, 0.0
    %v311 = vadd.f32 %v309, %v310
    %v312 = vsel %vm233, %v292, 0.0
    %v313 = vadd.f32 %v311, %v312
    %v314 = vsel %vm233, %v293, 0.0
    %v315 = vadd.f32 %v313, %v314
    %v316 = vsel %vm233, %v294, 0.0
    %v317 = vadd.f32 %v315, %v316
    %v318 = vsel %vm233, %v295, 0.0
    %v319 = vadd.f32 %v317, %v318
    %v320 = vsel %vm233, %v296, 0.0
    %v321 = vadd.f32 %v319, %v320
    %v322 = vsel %vm233, %v297, 0.0
    %v323 = vadd.f32 %v321, %v322
    %v324 = vsel %vm233, %v298, 0.0
    %v325 = vadd.f32 %v323, %v324
    %v326 = vsel %vm233, %v299, 0.0
    %v327 = vadd.f32 %v325, %v326
    %v328 = vsel %vm233, %v300, 0.0
    %v329 = vadd.f32 %v327, %v328
    %v330 = vsel %vm233, %v301, 0.0
    %v331 = vadd.f32 %v329, %v330
    %v332 = vsel %vm233, %v302, 0.0
    %v333 = vadd.f32 %v331, %v332
    %v334 = vrot.slane %v333, 4
    %v335 = vadd.f32 %v333, %v334
    %v336 = vrot.slane %v335, 2
    %v337 = vadd.f32 %v335, %v336
    %v338 = vrot.slane %v337, 1
    %v339 = vadd.f32 %v337, %v338
    %vm340 = vcmask 1040384
    %v341 = vsel %vm340, %v286, %v339
    %vm342 = vcmask 25600
    %343 = vst.msk [vmem:[#allocation2] sm:$0x3] %vm342, %v341
    // Predicated region
    $region10: #{tpu_custom_call.1} parent=1 // pred_check
      _
    $region11: #{tpu_custom_call.1} parent=1 // pred_check_branch
      %345 = sbr.rel (0) target = $region13
    $region12: #{tpu_custom_call.1} parent=1 // pred_region
      _
    $region13: #{tpu_custom_call.1} parent=1 // pred_fallthru
      _
    // Predicated region
    $region14: #{tpu_custom_call.1} parent=1 // pred_check
      _
    $region15: #{tpu_custom_call.1} parent=1 // pred_check_branch
      %347 = sbr.rel (0) target = $region17
    $region16: #{tpu_custom_call.1} parent=1 // pred_region
      %s349 = ssub.s32 32, 32
      %350 = vsyncadd [#allocation3], %s349
      %s352 = sshll.u32 [#allocation2], 4
      %s353 = int_to_ptr.vmem [resolvable:$true] %s352
      %355 = dma.vmem_to_hbm [thread:$0]  %s353, 32, %s3, [#allocation3]
    $region17: #{tpu_custom_call.1} parent=1 // pred_fallthru
      _
    // Predicated region
    $region18: #{tpu_custom_call.1} parent=1 // pred_check
      _
    $region19: #{tpu_custom_call.1} parent=1 // pred_check_branch
      %357 = sbr.rel (0) target = $region21
    $region20: #{tpu_custom_call.1} parent=1 // pred_region
      _
    $region21: #{tpu_custom_call.1} parent=1 // pred_fallthru
      _
    // Predicated region
    $region22: #{tpu_custom_call.1} parent=1 // pred_check
      _
    $region23: #{tpu_custom_call.1} parent=1 // pred_check_branch
      %359 = sbr.rel (0) target = $region25
    $region24: #{tpu_custom_call.1} parent=1 // pred_region
      %360 = dma.done [#allocation3], 32
    $region25: #{tpu_custom_call.1} parent=1 // pred_fallthru
      _
    %361 = vsyncpa [#allocation3], 1

</llo_original>
